<compile_context>
chip_gen: v5e
topology: v5e:2x2
jax: 0.10.0
libtpu: 0.0.40
codegen_flags: <defaults>
</compile_context>

<pallas_src>
import jax
import jax.numpy as jnp
import numpy as np
from jax.experimental import pallas as pl
from jax.experimental.pallas import tpu as pltpu

# ------------------------- model dimensions -------------------------
B = 2          # batch
H = 32         # hidden_size (encoder.hidden_size * num_directions)
V = 64         # output_size (vocab)
L = 2          # n_layers
S = 8          # encoder sequence length (MAX_LENGTH)

# ---- packed-output lane layout (single (B, 256) slab per step) ----
_O0, _O1 = 0, V                 # logits            [0, 64)
_H0a, _H0b = 64, 96             # h, layer 0        [64, 96)
_H1a, _H1b = 96, 128            # h, layer 1        [96, 128)
_C0a, _C0b = 128, 160           # c, layer 0
_C1a, _C1b = 160, 192           # c, layer 1
_CTa, _CTb = 192, 224           # concat_output
_AWa, _AWb = 224, 232           # attention weights (S=8)
PACK = 256                      # padded to 2 x 128 lanes


# ------------------------- Pallas kernel ----------------------------
def _decoder_kernel(
    emb_ref,      # (T, B, H)   embedded tokens for all steps (gathered in wrapper)
    h0_ref,       # (L, B, H)   initial hidden
    c0_ref,       # (L, B, H)   initial cell
    attn0_ref,    # (B, H)      initial last_attn_vector
    encT_ref,     # (H, B*S)    enc[b,s,h] at [h, b*S + s]
    encf_ref,     # (B*S, H)    enc[b,s,h] at [b*S + s, h]
    mask_ref,     # (B, B*S)    0 on own batch block, -1e30 elsewhere
    we0_ref,      # (H, 4H)     layer-0 W_ih (embedded half), g-cols prescaled x2
    wa0_ref,      # (H, 4H)     layer-0 W_ih (attn-vector half)
    wh0_ref,      # (H, 4H)     layer-0 W_hh
    b0_ref,       # (1, 4H)     layer-0 b_ih + b_hh
    wi1_ref,      # (H, 4H)     layer-1 W_ih
    wh1_ref,      # (H, 4H)     layer-1 W_hh
    b1_ref,       # (1, 4H)
    wattn_ref,    # (H, 2H)     cols[:H] = W_attn, col[H] = b_attn, rest zero
    wcr_ref,      # (H, H)      concat linear, rnn_out half
    wcc_ref,      # (H, H)      concat linear, context half
    bcat_ref,     # (1, H)
    wout_ref,     # (H, V)
    bout_ref,     # (1, V)
    packed_ref,   # (T, B, PACK) packed per-step outputs
):
    f32 = jnp.float32
    T = emb_ref.shape[0]

    # zero the whole output slab once (covers the pad lanes [232:256))
    packed_ref[...] = jnp.zeros(packed_ref.shape, f32)

    def gates_to_hc(gates, c_prev):
        # g-gate weight/bias columns were pre-scaled by 2 in the wrapper, so
        # tanh(x) == 2*sigmoid(2x) - 1  ->  a single transcendental pass over
        # the full (B, 4H) gate vreg instead of sigmoid+tanh over all lanes.
        sig = jax.nn.sigmoid(gates)
        i = sig[:, 0 * H:1 * H]
        f = sig[:, 1 * H:2 * H]
        g = 2.0 * sig[:, 2 * H:3 * H] - 1.0
        o = sig[:, 3 * H:4 * H]
        c_new = f * c_prev + i * g
        h_new = o * jnp.tanh(c_new)
        return h_new, c_new

    def step(t, carry):
        h_p0, h_p1, c_p0, c_p1, attn_vec = carry
        emb = emb_ref[t]                                               # (B, H)
        # embedding_dropout: identity (eval)

        # ---- LSTM layer 0: input = [embedded ; last_attn_vector], split weights
        g0 = (jnp.dot(emb, we0_ref[...], preferred_element_type=f32)
              + jnp.dot(attn_vec, wa0_ref[...], preferred_element_type=f32)
              + jnp.dot(h_p0, wh0_ref[...], preferred_element_type=f32)
              + b0_ref[...])
        h_l0, c_l0 = gates_to_hc(g0, c_p0)

        # ---- LSTM layer 1 (inter-layer dropout: identity in eval) ----
        g1 = (jnp.dot(h_l0, wi1_ref[...], preferred_element_type=f32)
              + jnp.dot(h_p1, wh1_ref[...], preferred_element_type=f32)
              + b1_ref[...])
        h_l1, c_l1 = gates_to_hc(g1, c_p1)
        rnn_out = h_l1                                                 # (B, H)

        # ---- attention 'general' (bias folded into the matmul) ----
        q_ext = jnp.dot(rnn_out, wattn_ref[...], preferred_element_type=f32)  # (B, 2H)
        q = q_ext[:, :H]                                               # (B, H)
        bias = q_ext[:, H:H + 1]                                       # (B, 1)
        # scores_all[b, b'*S+s] = <q[b], enc[b', s]>; off-block lanes masked
        scores = (jnp.dot(q, encT_ref[...], preferred_element_type=f32)
                  + bias + mask_ref[...])                              # (B, B*S)
        m = jnp.max(scores, axis=1, keepdims=True)
        e = jnp.exp(scores - m)
        attn_full = e / jnp.sum(e, axis=1, keepdims=True)              # 0 off-block
        context = jnp.dot(attn_full, encf_ref[...],
                          preferred_element_type=f32)                  # (B, H)
        # per-batch attention weights: off-block entries are exactly 0 -> block-sum
        attn_w = attn_full[:, 0:S]
        for j in range(1, B):
            attn_w = attn_w + attn_full[:, j * S:(j + 1) * S]          # (B, S)

        # ---- concat linear (split halves, no lane concat) + output head ----
        concat_out = jnp.tanh(
            jnp.dot(rnn_out, wcr_ref[...], preferred_element_type=f32)
            + jnp.dot(context, wcc_ref[...], preferred_element_type=f32)
            + bcat_ref[...])
        logits = (jnp.dot(concat_out, wout_ref[...], preferred_element_type=f32)
                  + bout_ref[...])                                     # (B, V)

        # ---- direct static-lane-offset stores into the packed slab ----
        packed_ref[t, :, _O0:_O1] = logits
        packed_ref[t, :, _H0a:_H0b] = h_l0
        packed_ref[t, :, _H1a:_H1b] = h_l1
        packed_ref[t, :, _C0a:_C0b] = c_l0
        packed_ref[t, :, _C1a:_C1b] = c_l1
        packed_ref[t, :, _CTa:_CTb] = concat_out
        packed_ref[t, :, _AWa:_AWb] = attn_w

        # input feeding: last_attn_vector <- concat_output
        return (h_l0, h_l1, c_l0, c_l1, concat_out)

    carry0 = (h0_ref[0], h0_ref[1], c0_ref[0], c0_ref[1], attn0_ref[...])
    jax.lax.fori_loop(0, T, step, carry0, unroll=True)


# ------------------------- wrapper ----------------------------------
@jax.jit
def _decode_steps(params, ids_tb, h0, c0, encoder_outputs_sbh, attn0):
    """Run T decode steps fully inside one pallas_call (state carried in vregs).
       ids_tb (T,B) int32; returns per-step
       (logits (T,B,V), h (T,L,B,H), c (T,L,B,H), attn_w (T,B,S), concat (T,B,H))."""
    T = ids_tb.shape[0]

    # embedding gather hoisted out of the kernel (no sequential dependence)
    emb_tbh = params["emb"][ids_tb.astype(jnp.int32)]                  # (T, B, H)

    enc_bsh = jnp.transpose(encoder_outputs_sbh, (1, 0, 2))            # (B, S, H)
    enc_flat = enc_bsh.reshape(B * S, H)                               # (B*S, H)
    enc_T = jnp.transpose(enc_flat)                                    # (H, B*S)

    # block-diagonal additive mask: 0 on a batch's own S block, -1e30 elsewhere
    negmask = (1.0 - jnp.kron(jnp.eye(B, dtype=jnp.float32),
                              jnp.ones((1, S), jnp.float32))) * (-1e30)

    kernel_inputs = (
        emb_tbh, h0, c0, attn0, enc_T, enc_flat, negmask,
        params["we0"], params["wa0"], params["wh0"], params["b0_k"],
        params["wi1"], params["wh1"], params["b1_k"],
        params["wattn_ext"], params["wc_r"], params["wc_c"], params["bcat"],
        params["wout_t"], params["bout"],
    )

    vmem_spec = pl.BlockSpec(memory_space=pltpu.MemorySpace.VMEM)
    packed = pl.pallas_call(
        _decoder_kernel,
        out_shape=jax.ShapeDtypeStruct((T, B, PACK), jnp.float32),
        in_specs=[vmem_spec] * len(kernel_inputs),
        out_specs=vmem_spec,
    )(*kernel_inputs)

    logits = packed[:, :, _O0:_O1]
    h_new = jnp.stack([packed[:, :, _H0a:_H0b], packed[:, :, _H1a:_H1b]], axis=1)
    c_new = jnp.stack([packed[:, :, _C0a:_C0b], packed[:, :, _C1a:_C1b]], axis=1)
    attn_w = packed[:, :, _AWa:_AWb]
    concat_out = packed[:, :, _CTa:_CTb]
    return logits, h_new, c_new, attn_w, concat_out


def lstm_attn_decoder(params, input_seq, h0, c0, encoder_outputs_sbh, last_attn_vector):
    """Exact equivalent of the module's forward (one decode step, eval mode).
       Returns (output (B,V), (h_new, c_new), attn_weights (B,1,S), concat_output (B,H))."""
    out, h_new, c_new, attn_w, concat_out = _decode_steps(
        params, input_seq.astype(jnp.int32)[None, :], h0, c0,
        encoder_outputs_sbh, last_attn_vector)
    return (out[0], (h_new[0], c_new[0]), attn_w[0].reshape(B, 1, S), concat_out[0])


# ------------------------- pure-JAX reference ------------------------
def reference_step(params, input_seq, h0, c0, enc_sbh, last_attn_vector):
    emb = params["emb"][input_seq]                                 # (B, H)
    x0 = jnp.concatenate([emb, last_attn_vector], axis=1)          # (B, 2H)

    def cell(x, h, c, wih_t, whh_t, b):
        g = x @ wih_t + h @ whh_t + b
        i = jax.nn.sigmoid(g[:, 0 * H:1 * H])
        f = jax.nn.sigmoid(g[:, 1 * H:2 * H])
        gg = jnp.tanh(g[:, 2 * H:3 * H])
        o = jax.nn.sigmoid(g[:, 3 * H:4 * H])
        cn = f * c + i * gg
        return o * jnp.tanh(cn), cn

    h_l0, c_l0 = cell(x0, h0[0], c0[0], params["wih0_t"], params["whh0_t"], params["b0"])
    h_l1, c_l1 = cell(h_l0, h0[1], c0[1], params["wih1_t"], params["whh1_t"], params["b1"])
    rnn_out = h_l1

    enc = jnp.transpose(enc_sbh, (1, 0, 2))                        # (B, S, H)
    energy = enc @ params["wattn_t"] + params["battn"]
    scores = jnp.einsum("bh,bsh->bs", rnn_out, energy)
    attn_w = jax.nn.softmax(scores, axis=1)
    context = jnp.einsum("bs,bsh->bh", attn_w, enc)

    concat_in = jnp.concatenate([rnn_out, context], axis=1)
    concat_out = jnp.tanh(concat_in @ params["wcat_t"] + params["bcat"])
    out = concat_out @ params["wout_t"] + params["bout"]
    return (out, (jnp.stack([h_l0, h_l1]), jnp.stack([c_l0, c_l1])),
            attn_w.reshape(B, 1, S), concat_out)


def reference_decode(params, ids_tb, h0, c0, enc_sbh, attn0):
    h, c, av = h0, c0, attn0
    outs, hs, cs, aws, cos = [], [], [], [], []
    for t in range(ids_tb.shape[0]):
        out, (h, c), aw, co = reference_step(params, ids_tb[t], h, c, enc_sbh, av)
        av = co                         # input feeding: last_attn_vector <- concat_output
        outs.append(out); hs.append(h); cs.append(c); aws.append(aw); cos.append(co)
    return (jnp.stack(outs), jnp.stack(hs), jnp.stack(cs),
            jnp.stack(aws), jnp.stack(cos))


# ------------------------- setup & run --------------------------------
def make_params(key):
    ks = jax.random.split(key, 16)
    n = lambda k, shape, s=0.1: (s * jax.random.normal(k, shape)).astype(jnp.float32)
    emb = n(ks[0], (V, H))
    wih0 = n(ks[1], (4 * H, 2 * H)); whh0 = n(ks[2], (4 * H, H))
    wih1 = n(ks[5], (4 * H, H));     whh1 = n(ks[6], (4 * H, H))
    wattn = n(ks[9], (H, H))                      # nn.Linear weight (out, in)
    wcat = n(ks[11], (H, 2 * H));    wout = n(ks[13], (V, H))
    b0 = (n(ks[3], (4 * H,)) + n(ks[4], (4 * H,))).reshape(1, 4 * H)
    b1 = (n(ks[7], (4 * H,)) + n(ks[8], (4 * H,))).reshape(1, 4 * H)
    battn = n(ks[10], (H,))

    p = {
        # reference-layout params
        "emb": emb,
        "wih0_t": wih0.T, "whh0_t": whh0.T, "b0": b0,
        "wih1_t": wih1.T, "whh1_t": whh1.T, "b1": b1,
        "wattn_t": wattn.T, "battn": battn.reshape(1, H),
        "wcat_t": wcat.T, "bcat": n(ks[12], (H,)).reshape(1, H),
        "wout_t": wout.T, "bout": n(ks[14], (V,)).reshape(1, V),
    }

    # ---- kernel-layout params ----
    # pre-scale the g-gate (tanh) columns by 2: kernel computes tanh(x) as
    # 2*sigmoid(2x) - 1, needing a single transcendental pass per cell.
    gscale = jnp.ones((4 * H,), jnp.float32).at[2 * H:3 * H].set(2.0)
    p["we0"] = p["wih0_t"][:H, :] * gscale          # embedded half of W_ih (layer 0)
    p["wa0"] = p["wih0_t"][H:, :] * gscale          # attn-vector half of W_ih (layer 0)
    p["wh0"] = p["whh0_t"] * gscale
    p["b0_k"] = b0 * gscale
    p["wi1"] = p["wih1_t"] * gscale
    p["wh1"] = p["whh1_t"] * gscale
    p["b1_k"] = b1 * gscale
    # attention bias folded as an extra MXU column (padded to 2H lanes)
    p["wattn_ext"] = (jnp.zeros((H, 2 * H), jnp.float32)
                      .at[:, :H].set(wattn)
                      .at[:, H].set(battn))
    # concat linear split into rnn_out / context halves (no lane concat in kernel)
    p["wc_r"] = p["wcat_t"][:H, :]
    p["wc_c"] = p["wcat_t"][H:, :]
    return {k: jnp.asarray(v) for k, v in p.items()}


if __name__ == "__main__":
    key = jax.random.PRNGKey(0)
    kp, k1, k2, k3, k4, k5 = jax.random.split(key, 6)

    params = make_params(kp)
    T = 4
    ids = jax.random.randint(k1, (T, B), 0, V, dtype=jnp.int32)
    h0 = 0.1 * jax.random.normal(k2, (L, B, H), dtype=jnp.float32)
    c0 = 0.1 * jax.random.normal(k3, (L, B, H), dtype=jnp.float32)
    encoder_outputs = 0.1 * jax.random.normal(k4, (S, B, H), dtype=jnp.float32)
    last_attn_vector = 0.1 * jax.random.normal(k5, (B, H), dtype=jnp.float32)

    # ---- single step == module forward ----
    out1, (h1, c1), aw1, co1 = lstm_attn_decoder(
        params, ids[0], h0, c0, encoder_outputs, last_attn_vector)
    jax.block_until_ready((out1, h1, c1, aw1, co1))

    r_out, (r_h, r_c), r_aw, r_co = reference_step(
        params, ids[0], h0, c0, encoder_outputs, last_attn_vector)
    np.testing.assert_allclose(np.asarray(out1), np.asarray(r_out), atol=1e-4, rtol=1e-4)
    np.testing.assert_allclose(np.asarray(h1), np.asarray(r_h), atol=1e-4, rtol=1e-4)
    np.testing.assert_allclose(np.asarray(c1), np.asarray(r_c), atol=1e-4, rtol=1e-4)
    np.testing.assert_allclose(np.asarray(aw1), np.asarray(r_aw), atol=1e-4, rtol=1e-4)
    np.testing.assert_allclose(np.asarray(co1), np.asarray(r_co), atol=1e-4, rtol=1e-4)

    # ---- fused T-step decode (single kernel invocation, state in vregs) ----
    outs, h_all, c_all, aw_all, co_all = _decode_steps(
        params, ids, h0, c0, encoder_outputs, last_attn_vector)
    jax.block_until_ready(outs)

    r_outs, r_hs, r_cs, r_aws, r_cos = reference_decode(
        params, ids, h0, c0, encoder_outputs, last_attn_vector)
    np.testing.assert_allclose(np.asarray(outs), np.asarray(r_outs), atol=1e-4, rtol=1e-4)
    np.testing.assert_allclose(np.asarray(h_all), np.asarray(r_hs), atol=1e-4, rtol=1e-4)
    np.testing.assert_allclose(np.asarray(c_all), np.asarray(r_cs), atol=1e-4, rtol=1e-4)
    np.testing.assert_allclose(np.asarray(aw_all), np.asarray(r_aws.reshape(T, B, S)),
                               atol=1e-4, rtol=1e-4)
    np.testing.assert_allclose(np.asarray(co_all), np.asarray(r_cos), atol=1e-4, rtol=1e-4)

    print("KERNEL_OK")
</pallas_src>

<mosaic_0001>
module attributes {stable_mosaic.version = 11 : i64} {
  func.func @_decoder_kernel(%arg0: memref<1x2x32xf32, #tpu.memory_space<vmem>>, %arg1: memref<2x2x32xf32, #tpu.memory_space<vmem>>, %arg2: memref<2x2x32xf32, #tpu.memory_space<vmem>>, %arg3: memref<2x32xf32, #tpu.memory_space<vmem>>, %arg4: memref<32x16xf32, #tpu.memory_space<vmem>>, %arg5: memref<16x32xf32, #tpu.memory_space<vmem>>, %arg6: memref<2x16xf32, #tpu.memory_space<vmem>>, %arg7: memref<32x128xf32, #tpu.memory_space<vmem>>, %arg8: memref<32x128xf32, #tpu.memory_space<vmem>>, %arg9: memref<32x128xf32, #tpu.memory_space<vmem>>, %arg10: memref<1x128xf32, #tpu.memory_space<vmem>>, %arg11: memref<32x128xf32, #tpu.memory_space<vmem>>, %arg12: memref<32x128xf32, #tpu.memory_space<vmem>>, %arg13: memref<1x128xf32, #tpu.memory_space<vmem>>, %arg14: memref<32x64xf32, #tpu.memory_space<vmem>>, %arg15: memref<32x32xf32, #tpu.memory_space<vmem>>, %arg16: memref<32x32xf32, #tpu.memory_space<vmem>>, %arg17: memref<1x32xf32, #tpu.memory_space<vmem>>, %arg18: memref<32x64xf32, #tpu.memory_space<vmem>>, %arg19: memref<1x64xf32, #tpu.memory_space<vmem>>, %arg20: memref<1x2x256xf32, #tpu.memory_space<vmem>>) attributes {dimension_semantics = [], scalar_prefetch = 0 : i64, scratch_operands = 0 : i64, tpu.core_type = #tpu.core_type<tc>} {
    %cst = arith.constant 0.000000e+00 : f32
    %0 = vector.broadcast %cst : f32 to vector<1x2x256xf32>
    %c0 = arith.constant 0 : index
    %c0_0 = arith.constant 0 : index
    %c0_1 = arith.constant 0 : index
    %1 = vector.load %arg20[%c0, %c0_0, %c0_1] : memref<1x2x256xf32, #tpu.memory_space<vmem>>, vector<1x2x256xf32>
    tpu.vector_store %arg20[%c0, %c0_0, %c0_1], %0 {strides = array<i32>} : memref<1x2x256xf32, #tpu.memory_space<vmem>>, vector<1x2x256xf32>,
    %c0_2 = arith.constant 0 : index
    %c0_3 = arith.constant 0 : index
    %c0_4 = arith.constant 0 : index
    %2 = vector.load %arg1[%c0_2, %c0_3, %c0_4] : memref<2x2x32xf32, #tpu.memory_space<vmem>>, vector<1x2x32xf32>
    %3 = vector.shape_cast %2 : vector<1x2x32xf32> to vector<2x32xf32>
    %c1 = arith.constant 1 : index
    %c0_5 = arith.constant 0 : index
    %c0_6 = arith.constant 0 : index
    %4 = vector.load %arg1[%c1, %c0_5, %c0_6] : memref<2x2x32xf32, #tpu.memory_space<vmem>>, vector<1x2x32xf32>
    %5 = vector.shape_cast %4 : vector<1x2x32xf32> to vector<2x32xf32>
    %c0_7 = arith.constant 0 : index
    %c0_8 = arith.constant 0 : index
    %c0_9 = arith.constant 0 : index
    %6 = vector.load %arg2[%c0_7, %c0_8, %c0_9] : memref<2x2x32xf32, #tpu.memory_space<vmem>>, vector<1x2x32xf32>
    %7 = vector.shape_cast %6 : vector<1x2x32xf32> to vector<2x32xf32>
    %c1_10 = arith.constant 1 : index
    %c0_11 = arith.constant 0 : index
    %c0_12 = arith.constant 0 : index
    %8 = vector.load %arg2[%c1_10, %c0_11, %c0_12] : memref<2x2x32xf32, #tpu.memory_space<vmem>>, vector<1x2x32xf32>
    %9 = vector.shape_cast %8 : vector<1x2x32xf32> to vector<2x32xf32>
    %c0_13 = arith.constant 0 : index
    %c0_14 = arith.constant 0 : index
    %10 = vector.load %arg3[%c0_13, %c0_14] : memref<2x32xf32, #tpu.memory_space<vmem>>, vector<2x32xf32>
    %c0_i32 = arith.constant 0 : i32
    %11 = arith.index_cast %c0_i32 : i32 to index
    %c0_15 = arith.constant 0 : index
    %c0_16 = arith.constant 0 : index
    %12 = vector.load %arg0[%11, %c0_15, %c0_16] : memref<1x2x32xf32, #tpu.memory_space<vmem>>, vector<1x2x32xf32>
    %13 = vector.shape_cast %12 : vector<1x2x32xf32> to vector<2x32xf32>
    %c0_17 = arith.constant 0 : index
    %c0_18 = arith.constant 0 : index
    %14 = vector.load %arg7[%c0_17, %c0_18] : memref<32x128xf32, #tpu.memory_space<vmem>>, vector<32x128xf32>
    %cst_19 = arith.constant dense<0.000000e+00> : vector<2x128xf32>
    %15 = tpu.matmul %13, %14, %cst_19 {dimension_numbers = #tpu.dot_dimension_numbers<[1], [0], [0], [1], [0, 0, 1, 1], [], []>} : vector<2x32xf32>, vector<32x128xf32>, vector<2x128xf32> -> vector<2x128xf32>
    %c0_20 = arith.constant 0 : index
    %c0_21 = arith.constant 0 : index
    %16 = vector.load %arg8[%c0_20, %c0_21] : memref<32x128xf32, #tpu.memory_space<vmem>>, vector<32x128xf32>
    %cst_22 = arith.constant dense<0.000000e+00> : vector<2x128xf32>
    %17 = tpu.matmul %10, %16, %cst_22 {dimension_numbers = #tpu.dot_dimension_numbers<[1], [0], [0], [1], [0, 0, 1, 1], [], []>} : vector<2x32xf32>, vector<32x128xf32>, vector<2x128xf32> -> vector<2x128xf32>
    %18 = arith.addf %15, %17 : vector<2x128xf32>
    %c0_23 = arith.constant 0 : index
    %c0_24 = arith.constant 0 : index
    %19 = vector.load %arg9[%c0_23, %c0_24] : memref<32x128xf32, #tpu.memory_space<vmem>>, vector<32x128xf32>
    %cst_25 = arith.constant dense<0.000000e+00> : vector<2x128xf32>
    %20 = tpu.matmul %3, %19, %cst_25 {dimension_numbers = #tpu.dot_dimension_numbers<[1], [0], [0], [1], [0, 0, 1, 1], [], []>} : vector<2x32xf32>, vector<32x128xf32>, vector<2x128xf32> -> vector<2x128xf32>
    %21 = arith.addf %18, %20 : vector<2x128xf32>
    %c0_26 = arith.constant 0 : index
    %c0_27 = arith.constant 0 : index
    %22 = vector.load %arg10[%c0_26, %c0_27] : memref<1x128xf32, #tpu.memory_space<vmem>>, vector<1x128xf32>
    %23 = vector.broadcast %22 : vector<1x128xf32> to vector<2x128xf32>
    %24 = arith.addf %21, %23 : vector<2x128xf32>
    %25 = arith.negf %24 : vector<2x128xf32>
    %26 = math.exp %25 : vector<2x128xf32>
    %cst_28 = arith.constant 1.000000e+00 : f32
    %27 = vector.broadcast %cst_28 : f32 to vector<2x128xf32>
    %28 = arith.addf %27, %26 : vector<2x128xf32>
    %29 = arith.divf %27, %28 : vector<2x128xf32>
    %30 = vector.extract_strided_slice %29 {offsets = [0, 0], sizes = [2, 32], strides = [1, 1]} : vector<2x128xf32> to vector<2x32xf32>
    %31 = vector.extract_strided_slice %29 {offsets = [0, 32], sizes = [2, 32], strides = [1, 1]} : vector<2x128xf32> to vector<2x32xf32>
    %32 = vector.extract_strided_slice %29 {offsets = [0, 64], sizes = [2, 32], strides = [1, 1]} : vector<2x128xf32> to vector<2x32xf32>
    %cst_29 = arith.constant 2.000000e+00 : f32
    %33 = vector.broadcast %cst_29 : f32 to vector<2x32xf32>
    %34 = arith.mulf %33, %32 : vector<2x32xf32>
    %cst_30 = arith.constant 1.000000e+00 : f32
    %35 = vector.broadcast %cst_30 : f32 to vector<2x32xf32>
    %36 = arith.subf %34, %35 : vector<2x32xf32>
    %37 = vector.extract_strided_slice %29 {offsets = [0, 96], sizes = [2, 32], strides = [1, 1]} : vector<2x128xf32> to vector<2x32xf32>
    %38 = arith.mulf %31, %7 : vector<2x32xf32>
    %39 = arith.mulf %30, %36 : vector<2x32xf32>
    %40 = arith.addf %38, %39 : vector<2x32xf32>
    %41 = math.tanh %40 : vector<2x32xf32>
    %42 = arith.mulf %37, %41 : vector<2x32xf32>
    %c0_31 = arith.constant 0 : index
    %c0_32 = arith.constant 0 : index
    %43 = vector.load %arg11[%c0_31, %c0_32] : memref<32x128xf32, #tpu.memory_space<vmem>>, vector<32x128xf32>
    %cst_33 = arith.constant dense<0.000000e+00> : vector<2x128xf32>
    %44 = tpu.matmul %42, %43, %cst_33 {dimension_numbers = #tpu.dot_dimension_numbers<[1], [0], [0], [1], [0, 0, 1, 1], [], []>} : vector<2x32xf32>, vector<32x128xf32>, vector<2x128xf32> -> vector<2x128xf32>
    %c0_34 = arith.constant 0 : index
    %c0_35 = arith.constant 0 : index
    %45 = vector.load %arg12[%c0_34, %c0_35] : memref<32x128xf32, #tpu.memory_space<vmem>>, vector<32x128xf32>
    %cst_36 = arith.constant dense<0.000000e+00> : vector<2x128xf32>
    %46 = tpu.matmul %5, %45, %cst_36 {dimension_numbers = #tpu.dot_dimension_numbers<[1], [0], [0], [1], [0, 0, 1, 1], [], []>} : vector<2x32xf32>, vector<32x128xf32>, vector<2x128xf32> -> vector<2x128xf32>
    %47 = arith.addf %44, %46 : vector<2x128xf32>
    %c0_37 = arith.constant 0 : index
    %c0_38 = arith.constant 0 : index
    %48 = vector.load %arg13[%c0_37, %c0_38] : memref<1x128xf32, #tpu.memory_space<vmem>>, vector<1x128xf32>
    %49 = vector.broadcast %48 : vector<1x128xf32> to vector<2x128xf32>
    %50 = arith.addf %47, %49 : vector<2x128xf32>
    %51 = arith.negf %50 : vector<2x128xf32>
    %52 = math.exp %51 : vector<2x128xf32>
    %cst_39 = arith.constant 1.000000e+00 : f32
    %53 = vector.broadcast %cst_39 : f32 to vector<2x128xf32>
    %54 = arith.addf %53, %52 : vector<2x128xf32>
    %55 = arith.divf %53, %54 : vector<2x128xf32>
    %56 = vector.extract_strided_slice %55 {offsets = [0, 0], sizes = [2, 32], strides = [1, 1]} : vector<2x128xf32> to vector<2x32xf32>
    %57 = vector.extract_strided_slice %55 {offsets = [0, 32], sizes = [2, 32], strides = [1, 1]} : vector<2x128xf32> to vector<2x32xf32>
    %58 = vector.extract_strided_slice %55 {offsets = [0, 64], sizes = [2, 32], strides = [1, 1]} : vector<2x128xf32> to vector<2x32xf32>
    %cst_40 = arith.constant 2.000000e+00 : f32
    %59 = vector.broadcast %cst_40 : f32 to vector<2x32xf32>
    %60 = arith.mulf %59, %58 : vector<2x32xf32>
    %cst_41 = arith.constant 1.000000e+00 : f32
    %61 = vector.broadcast %cst_41 : f32 to vector<2x32xf32>
    %62 = arith.subf %60, %61 : vector<2x32xf32>
    %63 = vector.extract_strided_slice %55 {offsets = [0, 96], sizes = [2, 32], strides = [1, 1]} : vector<2x128xf32> to vector<2x32xf32>
    %64 = arith.mulf %57, %9 : vector<2x32xf32>
    %65 = arith.mulf %56, %62 : vector<2x32xf32>
    %66 = arith.addf %64, %65 : vector<2x32xf32>
    %67 = math.tanh %66 : vector<2x32xf32>
    %68 = arith.mulf %63, %67 : vector<2x32xf32>
    %c0_42 = arith.constant 0 : index
    %c0_43 = arith.constant 0 : index
    %69 = vector.load %arg14[%c0_42, %c0_43] : memref<32x64xf32, #tpu.memory_space<vmem>>, vector<32x64xf32>
    %cst_44 = arith.constant dense<0.000000e+00> : vector<2x64xf32>
    %70 = tpu.matmul %68, %69, %cst_44 {dimension_numbers = #tpu.dot_dimension_numbers<[1], [0], [0], [1], [0, 0, 1, 1], [], []>} : vector<2x32xf32>, vector<32x64xf32>, vector<2x64xf32> -> vector<2x64xf32>
    %71 = vector.extract_strided_slice %70 {offsets = [0, 0], sizes = [2, 32], strides = [1, 1]} : vector<2x64xf32> to vector<2x32xf32>
    %72 = vector.extract_strided_slice %70 {offsets = [0, 32], sizes = [2, 1], strides = [1, 1]} : vector<2x64xf32> to vector<2x1xf32>
    %c0_45 = arith.constant 0 : index
    %c0_46 = arith.constant 0 : index
    %73 = vector.load %arg4[%c0_45, %c0_46] : memref<32x16xf32, #tpu.memory_space<vmem>>, vector<32x16xf32>
    %cst_47 = arith.constant dense<0.000000e+00> : vector<2x16xf32>
    %74 = tpu.matmul %71, %73, %cst_47 {dimension_numbers = #tpu.dot_dimension_numbers<[1], [0], [0], [1], [0, 0, 1, 1], [], []>} : vector<2x32xf32>, vector<32x16xf32>, vector<2x16xf32> -> vector<2x16xf32>
    %75 = vector.broadcast %72 : vector<2x1xf32> to vector<2x16xf32>
    %76 = arith.addf %74, %75 : vector<2x16xf32>
    %c0_48 = arith.constant 0 : index
    %c0_49 = arith.constant 0 : index
    %77 = vector.load %arg6[%c0_48, %c0_49] : memref<2x16xf32, #tpu.memory_space<vmem>>, vector<2x16xf32>
    %78 = arith.addf %76, %77 : vector<2x16xf32>
    %cst_50 = arith.constant dense<0xFF800000> : vector<2xf32>
    %79 = vector.multi_reduction <maximumf>, %78, %cst_50 [1] : vector<2x16xf32> to vector<2xf32>
    %80 = vector.shape_cast %79 : vector<2xf32> to vector<2x1xf32>
    %81 = vector.broadcast %80 : vector<2x1xf32> to vector<2x16xf32>
    %82 = arith.subf %78, %81 : vector<2x16xf32>
    %83 = math.exp %82 : vector<2x16xf32>
    %cst_51 = arith.constant dense<0.000000e+00> : vector<2xf32>
    %84 = vector.multi_reduction <add>, %83, %cst_51 [1] : vector<2x16xf32> to vector<2xf32>
    %85 = vector.shape_cast %84 : vector<2xf32> to vector<2x1xf32>
    %86 = vector.broadcast %85 : vector<2x1xf32> to vector<2x16xf32>
    %87 = arith.divf %83, %86 : vector<2x16xf32>
    %c0_52 = arith.constant 0 : index
    %c0_53 = arith.constant 0 : index
    %88 = vector.load %arg5[%c0_52, %c0_53] : memref<16x32xf32, #tpu.memory_space<vmem>>, vector<16x32xf32>
    %cst_54 = arith.constant dense<0.000000e+00> : vector<2x32xf32>
    %89 = tpu.matmul %87, %88, %cst_54 {dimension_numbers = #tpu.dot_dimension_numbers<[1], [0], [0], [1], [0, 0, 1, 1], [], []>} : vector<2x16xf32>, vector<16x32xf32>, vector<2x32xf32> -> vector<2x32xf32>
    %90 = vector.extract_strided_slice %87 {offsets = [0, 0], sizes = [2, 8], strides = [1, 1]} : vector<2x16xf32> to vector<2x8xf32>
    %91 = vector.extract_strided_slice %87 {offsets = [0, 8], sizes = [2, 8], strides = [1, 1]} : vector<2x16xf32> to vector<2x8xf32>
    %92 = arith.addf %90, %91 : vector<2x8xf32>
    %c0_55 = arith.constant 0 : index
    %c0_56 = arith.constant 0 : index
    %93 = vector.load %arg15[%c0_55, %c0_56] : memref<32x32xf32, #tpu.memory_space<vmem>>, vector<32x32xf32>
    %cst_57 = arith.constant dense<0.000000e+00> : vector<2x32xf32>
    %94 = tpu.matmul %68, %93, %cst_57 {dimension_numbers = #tpu.dot_dimension_numbers<[1], [0], [0], [1], [0, 0, 1, 1], [], []>} : vector<2x32xf32>, vector<32x32xf32>, vector<2x32xf32> -> vector<2x32xf32>
    %c0_58 = arith.constant 0 : index
    %c0_59 = arith.constant 0 : index
    %95 = vector.load %arg16[%c0_58, %c0_59] : memref<32x32xf32, #tpu.memory_space<vmem>>, vector<32x32xf32>
    %cst_60 = arith.constant dense<0.000000e+00> : vector<2x32xf32>
    %96 = tpu.matmul %89, %95, %cst_60 {dimension_numbers = #tpu.dot_dimension_numbers<[1], [0], [0], [1], [0, 0, 1, 1], [], []>} : vector<2x32xf32>, vector<32x32xf32>, vector<2x32xf32> -> vector<2x32xf32>
    %97 = arith.addf %94, %96 : vector<2x32xf32>
    %c0_61 = arith.constant 0 : index
    %c0_62 = arith.constant 0 : index
    %98 = vector.load %arg17[%c0_61, %c0_62] : memref<1x32xf32, #tpu.memory_space<vmem>>, vector<1x32xf32>
    %99 = vector.broadcast %98 : vector<1x32xf32> to vector<2x32xf32>
    %100 = arith.addf %97, %99 : vector<2x32xf32>
    %101 = math.tanh %100 : vector<2x32xf32>
    %c0_63 = arith.constant 0 : index
    %c0_64 = arith.constant 0 : index
    %102 = vector.load %arg18[%c0_63, %c0_64] : memref<32x64xf32, #tpu.memory_space<vmem>>, vector<32x64xf32>
    %cst_65 = arith.constant dense<0.000000e+00> : vector<2x64xf32>
    %103 = tpu.matmul %101, %102, %cst_65 {dimension_numbers = #tpu.dot_dimension_numbers<[1], [0], [0], [1], [0, 0, 1, 1], [], []>} : vector<2x32xf32>, vector<32x64xf32>, vector<2x64xf32> -> vector<2x64xf32>
    %c0_66 = arith.constant 0 : index
    %c0_67 = arith.constant 0 : index
    %104 = vector.load %arg19[%c0_66, %c0_67] : memref<1x64xf32, #tpu.memory_space<vmem>>, vector<1x64xf32>
    %105 = vector.broadcast %104 : vector<1x64xf32> to vector<2x64xf32>
    %106 = arith.addf %103, %105 : vector<2x64xf32>
    %107 = arith.index_cast %c0_i32 : i32 to index
    %c0_68 = arith.constant 0 : index
    %c0_69 = arith.constant 0 : index
    %108 = vector.load %arg20[%107, %c0_68, %c0_69] : memref<1x2x256xf32, #tpu.memory_space<vmem>>, vector<1x2x64xf32>
    %109 = vector.shape_cast %108 : vector<1x2x64xf32> to vector<2x64xf32>
    %110 = vector.shape_cast %106 : vector<2x64xf32> to vector<1x2x64xf32>
    tpu.vector_store %arg20[%107, %c0_68, %c0_69], %110 {strides = array<i32>} : memref<1x2x256xf32, #tpu.memory_space<vmem>>, vector<1x2x64xf32>,
    %111 = arith.index_cast %c0_i32 : i32 to index
    %c0_70 = arith.constant 0 : index
    %c64 = arith.constant 64 : index
    %112 = vector.load %arg20[%111, %c0_70, %c64] : memref<1x2x256xf32, #tpu.memory_space<vmem>>, vector<1x2x32xf32>
    %113 = vector.shape_cast %112 : vector<1x2x32xf32> to vector<2x32xf32>
    %114 = vector.shape_cast %42 : vector<2x32xf32> to vector<1x2x32xf32>
    tpu.vector_store %arg20[%111, %c0_70, %c64], %114 {strides = array<i32>} : memref<1x2x256xf32, #tpu.memory_space<vmem>>, vector<1x2x32xf32>,
    %115 = arith.index_cast %c0_i32 : i32 to index
    %c0_71 = arith.constant 0 : index
    %c96 = arith.constant 96 : index
    %116 = vector.load %arg20[%115, %c0_71, %c96] : memref<1x2x256xf32, #tpu.memory_space<vmem>>, vector<1x2x32xf32>
    %117 = vector.shape_cast %116 : vector<1x2x32xf32> to vector<2x32xf32>
    %118 = vector.shape_cast %68 : vector<2x32xf32> to vector<1x2x32xf32>
    tpu.vector_store %arg20[%115, %c0_71, %c96], %118 {strides = array<i32>} : memref<1x2x256xf32, #tpu.memory_space<vmem>>, vector<1x2x32xf32>,
    %119 = arith.index_cast %c0_i32 : i32 to index
    %c0_72 = arith.constant 0 : index
    %c128 = arith.constant 128 : index
    %120 = vector.load %arg20[%119, %c0_72, %c128] : memref<1x2x256xf32, #tpu.memory_space<vmem>>, vector<1x2x32xf32>
    %121 = vector.shape_cast %120 : vector<1x2x32xf32> to vector<2x32xf32>
    %122 = vector.shape_cast %40 : vector<2x32xf32> to vector<1x2x32xf32>
    tpu.vector_store %arg20[%119, %c0_72, %c128], %122 {strides = array<i32>} : memref<1x2x256xf32, #tpu.memory_space<vmem>>, vector<1x2x32xf32>,
    %123 = arith.index_cast %c0_i32 : i32 to index
    %c0_73 = arith.constant 0 : index
    %c160 = arith.constant 160 : index
    %124 = vector.load %arg20[%123, %c0_73, %c160] : memref<1x2x256xf32, #tpu.memory_space<vmem>>, vector<1x2x32xf32>
    %125 = vector.shape_cast %124 : vector<1x2x32xf32> to vector<2x32xf32>
    %126 = vector.shape_cast %66 : vector<2x32xf32> to vector<1x2x32xf32>
    tpu.vector_store %arg20[%123, %c0_73, %c160], %126 {strides = array<i32>} : memref<1x2x256xf32, #tpu.memory_space<vmem>>, vector<1x2x32xf32>,
    %127 = arith.index_cast %c0_i32 : i32 to index
    %c0_74 = arith.constant 0 : index
    %c192 = arith.constant 192 : index
    %128 = vector.load %arg20[%127, %c0_74, %c192] : memref<1x2x256xf32, #tpu.memory_space<vmem>>, vector<1x2x32xf32>
    %129 = vector.shape_cast %128 : vector<1x2x32xf32> to vector<2x32xf32>
    %130 = vector.shape_cast %101 : vector<2x32xf32> to vector<1x2x32xf32>
    tpu.vector_store %arg20[%127, %c0_74, %c192], %130 {strides = array<i32>} : memref<1x2x256xf32, #tpu.memory_space<vmem>>, vector<1x2x32xf32>,
    %131 = arith.index_cast %c0_i32 : i32 to index
    %c0_75 = arith.constant 0 : index
    %c224 = arith.constant 224 : index
    %132 = vector.load %arg20[%131, %c0_75, %c224] : memref<1x2x256xf32, #tpu.memory_space<vmem>>, vector<1x2x8xf32>
    %133 = vector.shape_cast %132 : vector<1x2x8xf32> to vector<2x8xf32>
    %134 = vector.shape_cast %92 : vector<2x8xf32> to vector<1x2x8xf32>
    tpu.vector_store %arg20[%131, %c0_75, %c224], %134 {strides = array<i32>} : memref<1x2x256xf32, #tpu.memory_space<vmem>>, vector<1x2x8xf32>,
    %c1_i32 = arith.constant 1 : i32
    return
  }
}

</mosaic_0001>

<llo_original>
// kernel: _decode_steps.1
$region0: #{_decode_steps.1}
  #allocation0 [shape = 'u32[]', space=smem, size = 0x4, offset = 0x4, fixed_abs, tag = 'smem constant byte address 0x4 - core index']
  #allocation1 [shape = 'u32[72,128]{1,0:T(1,128)}', space=vmem, size = 0x9000, scoped, tag = 'internal scratch']
  %s0 = inlined_call_operand.vmem [shape: f32[1,2,32], index: 0, kind: input, shape index: {}]
  %s1 = inlined_call_operand.vmem [shape: f32[2,2,32], index: 1, kind: input, shape index: {}]
  %s2 = inlined_call_operand.vmem [shape: f32[2,2,32], index: 2, kind: input, shape index: {}]
  %s3 = inlined_call_operand.vmem [shape: f32[2,32], index: 3, kind: input, shape index: {}]
  %s4 = inlined_call_operand.vmem [shape: f32[32,16], index: 4, kind: input, shape index: {}]
  %s5 = inlined_call_operand.vmem [shape: f32[16,32], index: 5, kind: input, shape index: {}]
  %s6 = inlined_call_operand.vmem [shape: f32[2,16], index: 6, kind: input, shape index: {}]
  %s7 = inlined_call_operand.vmem [shape: f32[32,128], index: 7, kind: input, shape index: {}]
  %s8 = inlined_call_operand.vmem [shape: f32[32,128], index: 8, kind: input, shape index: {}]
  %s9 = inlined_call_operand.vmem [shape: f32[32,128], index: 9, kind: input, shape index: {}]
  %s10 = inlined_call_operand.vmem [shape: f32[1,128], index: 10, kind: input, shape index: {}]
  %s11 = inlined_call_operand.vmem [shape: f32[32,128], index: 11, kind: input, shape index: {}]
  %s12 = inlined_call_operand.vmem [shape: f32[32,128], index: 12, kind: input, shape index: {}]
  %s13 = inlined_call_operand.vmem [shape: f32[1,128], index: 13, kind: input, shape index: {}]
  %s14 = inlined_call_operand.vmem [shape: f32[32,64], index: 14, kind: input, shape index: {}]
  %s15 = inlined_call_operand.hbm [shape: f32[32,32], index: 15, kind: input, shape index: {}]
  %s16 = inlined_call_operand.hbm [shape: f32[32,32], index: 16, kind: input, shape index: {}]
  %s17 = inlined_call_operand.vmem [shape: f32[1,32], index: 17, kind: input, shape index: {}]
  %s18 = inlined_call_operand.hbm [shape: f32[32,64], index: 18, kind: input, shape index: {}]
  %s19 = inlined_call_operand.vmem [shape: f32[1,64], index: 19, kind: input, shape index: {}]
  %s20 = inlined_call_operand.vmem [shape: f32[1,2,256], index: 20, kind: output, shape index: {}]
  %s21 = sld [smem:[#allocation0]]
  $region102: #{_decode_steps.1} parent=0
    _
  %s23 = ssub.s32 1, %s21
  %s24 = scalar_select 0, %s23, %s21
  $region1: #{_decode_steps.1} parent=0
    #allocation2 [shape = 'u8[16384]{0}', space=vmem, size = 0x4000, scoped, tag = 'input window, operand 15, single buffered']
    #allocation3 [shape = 's32[1]{0}', space=sflag, size = 0x4, scoped, tag = 'scoped memory for _decode_steps.1']
    #allocation4 [shape = 'u8[16384]{0}', space=vmem, size = 0x4000, scoped, tag = 'input window, operand 16, single buffered']
    #allocation5 [shape = 's32[1]{0}', space=sflag, size = 0x4, scoped, tag = 'scoped memory for _decode_steps.1']
    #allocation6 [shape = 'u8[16384]{0}', space=vmem, size = 0x4000, scoped, tag = 'input window, operand 18, single buffered']
    %25 = vsyncpa [#allocation3], 0
    %26 = vsyncpa [#allocation5], 0
    // Predicated region
    $region2: #{_decode_steps.1} parent=1 // pred_check
      _
    $region3: #{_decode_steps.1} parent=1 // pred_check_branch
      %28 = sbr.rel (0) target = $region5
    $region4: #{_decode_steps.1} parent=1 // pred_region
      _
    $region5: #{_decode_steps.1} parent=1 // pred_fallthru
      _
    // Predicated region
    $region6: #{_decode_steps.1} parent=1 // pred_check
      _
    $region7: #{_decode_steps.1} parent=1 // pred_check_branch
      %30 = sbr.rel (0) target = $region9
    $region8: #{_decode_steps.1} parent=1 // pred_region
      _
    $region9: #{_decode_steps.1} parent=1 // pred_fallthru
      _
    // Predicated region
    $region10: #{_decode_steps.1} parent=1 // pred_check
      _
    $region11: #{_decode_steps.1} parent=1 // pred_check_branch
      %32 = sbr.rel (0) target = $region13
    $region12: #{_decode_steps.1} parent=1 // pred_region
      _
    $region13: #{_decode_steps.1} parent=1 // pred_fallthru
      _
    // Predicated region
    $region14: #{_decode_steps.1} parent=1 // pred_check
      _
    $region15: #{_decode_steps.1} parent=1 // pred_check_branch
      %34 = sbr.rel (0) target = $region17
    $region16: #{_decode_steps.1} parent=1 // pred_region
      _
    $region17: #{_decode_steps.1} parent=1 // pred_fallthru
      _
    // Predicated region
    $region18: #{_decode_steps.1} parent=1 // pred_check
      _
    $region19: #{_decode_steps.1} parent=1 // pred_check_branch
      %36 = sbr.rel (0) target = $region21
    $region20: #{_decode_steps.1} parent=1 // pred_region
      _
    $region21: #{_decode_steps.1} parent=1 // pred_fallthru
      _
    // Predicated region
    $region22: #{_decode_steps.1} parent=1 // pred_check
      _
    $region23: #{_decode_steps.1} parent=1 // pred_check_branch
      %38 = sbr.rel (0) target = $region25
    $region24: #{_decode_steps.1} parent=1 // pred_region
      _
    $region25: #{_decode_steps.1} parent=1 // pred_fallthru
      _
    // Predicated region
    $region26: #{_decode_steps.1} parent=1 // pred_check
      _
    $region27: #{_decode_steps.1} parent=1 // pred_check_branch
      %40 = sbr.rel (0) target = $region29
    $region28: #{_decode_steps.1} parent=1 // pred_region
      _
    $region29: #{_decode_steps.1} parent=1 // pred_fallthru
      _
    // Predicated region
    $region30: #{_decode_steps.1} parent=1 // pred_check
      _
    $region31: #{_decode_steps.1} parent=1 // pred_check_branch
      %42 = sbr.rel (0) target = $region33
    $region32: #{_decode_steps.1} parent=1 // pred_region
      _
    $region33: #{_decode_steps.1} parent=1 // pred_fallthru
      _
    // Predicated region
    $region34: #{_decode_steps.1} parent=1 // pred_check
      _
    $region35: #{_decode_steps.1} parent=1 // pred_check_branch
      %44 = sbr.rel (0) target = $region37
    $region36: #{_decode_steps.1} parent=1 // pred_region
      _
    $region37: #{_decode_steps.1} parent=1 // pred_fallthru
      _
    // Predicated region
    $region38: #{_decode_steps.1} parent=1 // pred_check
      _
    $region39: #{_decode_steps.1} parent=1 // pred_check_branch
      %46 = sbr.rel (0) target = $region41
    $region40: #{_decode_steps.1} parent=1 // pred_region
      _
    $region41: #{_decode_steps.1} parent=1 // pred_fallthru
      _
    // Predicated region
    $region42: #{_decode_steps.1} parent=1 // pred_check
      _
    $region43: #{_decode_steps.1} parent=1 // pred_check_branch
      %48 = sbr.rel (0) target = $region45
    $region44: #{_decode_steps.1} parent=1 // pred_region
      _
    $region45: #{_decode_steps.1} parent=1 // pred_fallthru
      _
    // Predicated region
    $region46: #{_decode_steps.1} parent=1 // pred_check
      _
    $region47: #{_decode_steps.1} parent=1 // pred_check_branch
      %50 = sbr.rel (0) target = $region49
    $region48: #{_decode_steps.1} parent=1 // pred_region
      _
    $region49: #{_decode_steps.1} parent=1 // pred_fallthru
      _
    // Predicated region
    $region50: #{_decode_steps.1} parent=1 // pred_check
      _
    $region51: #{_decode_steps.1} parent=1 // pred_check_branch
      %52 = sbr.rel (0) target = $region53
    $region52: #{_decode_steps.1} parent=1 // pred_region
      _
    $region53: #{_decode_steps.1} parent=1 // pred_fallthru
      _
    // Predicated region
    $region54: #{_decode_steps.1} parent=1 // pred_check
      _
    $region55: #{_decode_steps.1} parent=1 // pred_check_branch
      %54 = sbr.rel (0) target = $region57
    $region56: #{_decode_steps.1} parent=1 // pred_region
      _
    $region57: #{_decode_steps.1} parent=1 // pred_fallthru
      _
    // Predicated region
    $region58: #{_decode_steps.1} parent=1 // pred_check
      _
    $region59: #{_decode_steps.1} parent=1 // pred_check_branch
      %56 = sbr.rel (0) target = $region61
    $region60: #{_decode_steps.1} parent=1 // pred_region
      _
    $region61: #{_decode_steps.1} parent=1 // pred_fallthru
      _
    // Predicated region
    $region62: #{_decode_steps.1} parent=1 // pred_check
      _
    $region63: #{_decode_steps.1} parent=1 // pred_check_branch
      %58 = sbr.rel (0) target = $region65
    $region64: #{_decode_steps.1} parent=1 // pred_region
      %60 = vsyncadd [#allocation3], 0
      %s61 = sshll.u32 %s15, 4
      %s62 = int_to_ptr.hbm [resolvable:$true] %s61
      %s63 = sshll.u32 [#allocation2], 4
      %s64 = int_to_ptr.vmem [resolvable:$true] %s63
      %69 = dma.hbm_to_vmem [thread:$0]  %s62, 512, %s64, [#allocation3], 128, 128, 8
    $region65: #{_decode_steps.1} parent=1 // pred_fallthru
      _
    // Predicated region
    $region66: #{_decode_steps.1} parent=1 // pred_check
      _
    $region67: #{_decode_steps.1} parent=1 // pred_check_branch
      %71 = sbr.rel (0) target = $region69
    $region68: #{_decode_steps.1} parent=1 // pred_region
      %73 = vsyncadd [#allocation5], 0
      %s74 = sshll.u32 %s16, 4
      %s75 = int_to_ptr.hbm [resolvable:$true] %s74
      %s76 = sshll.u32 [#allocation4], 4
      %s77 = int_to_ptr.vmem [resolvable:$true] %s76
      %82 = dma.hbm_to_vmem [thread:$0]  %s75, 512, %s77, [#allocation5], 128, 128, 8
    $region69: #{_decode_steps.1} parent=1 // pred_fallthru
      _
    // Predicated region
    $region70: #{_decode_steps.1} parent=1 // pred_check
      _
    $region71: #{_decode_steps.1} parent=1 // pred_check_branch
      %84 = sbr.rel (0) target = $region73
    $region72: #{_decode_steps.1} parent=1 // pred_region
      _
    $region73: #{_decode_steps.1} parent=1 // pred_fallthru
      _
    // Predicated region
    $region74: #{_decode_steps.1} parent=1 // pred_check
      _
    $region75: #{_decode_steps.1} parent=1 // pred_check_branch
      %86 = sbr.rel (0) target = $region77
    $region76: #{_decode_steps.1} parent=1 // pred_region
      %88 = vsyncadd [#allocation5], 0
      %s89 = sshll.u32 %s18, 4
      %s90 = int_to_ptr.hbm [resolvable:$true] %s89
      %s91 = sshll.u32 [#allocation6], 4
      %s92 = int_to_ptr.vmem [resolvable:$true] %s91
      %97 = dma.hbm_to_vmem [thread:$0]  %s90, 512, %s92, [#allocation5], 128, 128, 8
    $region77: #{_decode_steps.1} parent=1 // pred_fallthru
      _
    // Predicated region
    $region78: #{_decode_steps.1} parent=1 // pred_check
      _
    $region79: #{_decode_steps.1} parent=1 // pred_check_branch
      %99 = sbr.rel (0) target = $region81
    $region80: #{_decode_steps.1} parent=1 // pred_region
      _
    $region81: #{_decode_steps.1} parent=1 // pred_fallthru
      _
    // Predicated region
    $region82: #{_decode_steps.1} parent=1 // pred_check
      _
    $region83: #{_decode_steps.1} parent=1 // pred_check_branch
      %101 = sbr.rel (0) target = $region85
    $region84: #{_decode_steps.1} parent=1 // pred_region
      %103 = dma.done [#allocation3], 512
    $region85: #{_decode_steps.1} parent=1 // pred_fallthru
      _
    // Predicated region
    $region86: #{_decode_steps.1} parent=1 // pred_check
      _
    $region87: #{_decode_steps.1} parent=1 // pred_check_branch
      %105 = sbr.rel (0) target = $region89
    $region88: #{_decode_steps.1} parent=1 // pred_region
      %107 = dma.done [#allocation5], 512
    $region89: #{_decode_steps.1} parent=1 // pred_fallthru
      _
    // Predicated region
    $region90: #{_decode_steps.1} parent=1 // pred_check
      _
    $region91: #{_decode_steps.1} parent=1 // pred_check_branch
      %109 = sbr.rel (0) target = $region93
    $region92: #{_decode_steps.1} parent=1 // pred_region
      %111 = dma.done [#allocation5], 512
    $region93: #{_decode_steps.1} parent=1 // pred_fallthru
      _
    %112 = vst [vmem:[%s20] sm:$0xf] 0.0
    %v113 = vld [vmem:[%s1] sm:$0x3]
    %s114 = scalar_lea.vmem %s1, 2
    %v115 = vld [vmem:[%s114] sm:$0x3]
    %v116 = vld [vmem:[%s2] sm:$0x3]
    %s117 = scalar_lea.vmem %s2, 2
    %v118 = vld [vmem:[%s117] sm:$0x3]
    %v119 = vld [vmem:[%s3] sm:$0x3]
    %v120 = vld [vmem:[%s0] sm:$0x3]
    %v121 = vld [vmem:[%s7] sm:$0xff]
    %v122 = vld [vmem:[%s7 + $0x8] sm:$0xff]
    %v123 = vld [vmem:[%s7 + $0x10] sm:$0xff]
    %v124 = vld [vmem:[%s7 + $0x18] sm:$0xff]
    %v125 = vld [vmem:[%s8] sm:$0xff]
    %v126 = vld [vmem:[%s8 + $0x8] sm:$0xff]
    %v127 = vld [vmem:[%s8 + $0x10] sm:$0xff]
    %v128 = vld [vmem:[%s8 + $0x18] sm:$0xff]
    %vm129 = vcmask 261120
    %v131 = vsel %vm129, %v119, 0
    %133 = vmatpush.msra.mxu0 0.0
    %134 = vmatpush.msra.mxu0 0.0
    %135 = vmatpush.msra.mxu0 0.0
    %136 = vmatpush.msra.mxu0 0.0
    %137 = vmatpush.msra.mxu0 0.0
    %138 = vmatpush.msra.mxu0 0.0
    %139 = vmatpush.msra.mxu0 0.0
    %140 = vmatpush.msra.mxu0 0.0
    %141 = vmatpush.msra.mxu0 0.0
    %142 = vmatpush.msra.mxu0 0.0
    %143 = vmatpush.msra.mxu0 0.0
    %144 = vmatpush.msra.mxu0 0.0
    %145 = vmatpush.msra.mxu0 %v128
    %146 = vmatpush.msra.mxu0 %v127
    %147 = vmatpush.msra.mxu0 %v126
    %148 = vmatpush.msra.mxu0 %v125
    %149 = vmatmul.f32.gmra.mxu0 %v131
    %v150 = vpop.f32.mrf.mxu0
    %v151 = vadd.f32 0.0, %v150
    %152 = vdwg.mxu0
    %v154 = vsel %vm129, %v120, 0
    %156 = vmatpush.msra.mxu0 0.0
    %157 = vmatpush.msra.mxu0 0.0
    %158 = vmatpush.msra.mxu0 0.0
    %159 = vmatpush.msra.mxu0 0.0
    %160 = vmatpush.msra.mxu0 0.0
    %161 = vmatpush.msra.mxu0 0.0
    %162 = vmatpush.msra.mxu0 0.0
    %163 = vmatpush.msra.mxu0 0.0
    %164 = vmatpush.msra.mxu0 0.0
    %165 = vmatpush.msra.mxu0 0.0
    %166 = vmatpush.msra.mxu0 0.0
    %167 = vmatpush.msra.mxu0 0.0
    %168 = vmatpush.msra.mxu0 %v124
    %169 = vmatpush.msra.mxu0 %v123
    %170 = vmatpush.msra.mxu0 %v122
    %171 = vmatpush.msra.mxu0 %v121
    %172 = vmatmul.f32.gmra.mxu0 %v154
    %v173 = vpop.f32.mrf.mxu0
    %v174 = vadd.f32 %v151, %v173
    %175 = vdwg.mxu0
    %v176 = vld [vmem:[%s9] sm:$0xff]
    %v177 = vld [vmem:[%s9 + $0x8] sm:$0xff]
    %v178 = vld [vmem:[%s9 + $0x10] sm:$0xff]
    %v179 = vld [vmem:[%s9 + $0x18] sm:$0xff]
    %v181 = vsel %vm129, %v113, 0
    %183 = vmatpush.msra.mxu0 0.0
    %184 = vmatpush.msra.mxu0 0.0
    %185 = vmatpush.msra.mxu0 0.0
    %186 = vmatpush.msra.mxu0 0.0
    %187 = vmatpush.msra.mxu0 0.0
    %188 = vmatpush.msra.mxu0 0.0
    %189 = vmatpush.msra.mxu0 0.0
    %190 = vmatpush.msra.mxu0 0.0
    %191 = vmatpush.msra.mxu0 0.0
    %192 = vmatpush.msra.mxu0 0.0
    %193 = vmatpush.msra.mxu0 0.0
    %194 = vmatpush.msra.mxu0 0.0
    %195 = vmatpush.msra.mxu0 %v179
    %196 = vmatpush.msra.mxu0 %v178
    %197 = vmatpush.msra.mxu0 %v177
    %198 = vmatpush.msra.mxu0 %v176
    %199 = vmatmul.f32.gmra.mxu0 %v181
    %v200 = vpop.f32.mrf.mxu0
    %v201 = vadd.f32 0.0, %v200
    %202 = vdwg.mxu0
    %v203 = vadd.f32 %v174, %v201
    %v204 = vld [vmem:[%s10] sm:$0x1]
    %v206 = vperm.slane %v204, 0
    %v208 = vadd.f32 %v203, %v206
    %v209 = vxor.u32 %v208, 2147483648
    %v210 = vmul.f32 %v209, 1.442695
    %v211 = vpow.pop %v210
    %v212 = vadd.f32 %v211, 1.0
    %v213 = vrcp.pop %v212
    %v214 = vmul.f32 %v212, %v213
    %v215 = vsub.f32 1.0, %v214
    %v216 = vmul.f32 %v213, %v215
    %v217 = vadd.f32 %v213, %v216
    %vm218 = vweird.f32 %v212
    %vm219 = vweird.f32 %v213
    %vm220 = vmor %vm218, %vm219
    %v221 = vsel %vm220, %v213, %v217
    %v222 = vand.u32 2147483647, %v212
    %vm223 = vcmp.eq.f32.partialorder %v222, 8.507059e+37
    %v224 = vand.u32 %v212, 2147483648
    %v225 = vor.u32 1.1754944e-38, %v224
    %v226 = vsel %vm223, %v225, %v221
    %v227 = vmul.f32 1.0, %v226
    %v228 = vmul.f32 %v227, 2.0
    %v229 = vsub.f32 %v228, 1.0
    %231 = vrot.lane.b32.xlu0 %v116, 32
    %v232 = vpop.permute.xlu0 %231
    %v234 = vmul.f32 %v227, %v232
    %236 = vrot.lane.b32.xlu0 %v229, 64
    %v237 = vpop.permute.xlu0 %236
    %v239 = vmul.f32 %v227, %v237
    %241 = vrot.lane.b32.xlu0 %v239, 32
    %v242 = vpop.permute.xlu0 %241
    %v244 = vadd.f32 %v234, %v242
    %v245 = vtanh.pop %v244
    %247 = vrot.lane.b32.xlu0 %v245, 64
    %v248 = vpop.permute.xlu0 %247
    %v250 = vmul.f32 %v227, %v248
    %v251 = vld [vmem:[%s11] sm:$0xff]
    %v252 = vld [vmem:[%s11 + $0x8] sm:$0xff]
    %v253 = vld [vmem:[%s11 + $0x10] sm:$0xff]
    %v254 = vld [vmem:[%s11 + $0x18] sm:$0xff]
    %v255 = vld [vmem:[%s12] sm:$0xff]
    %v256 = vld [vmem:[%s12 + $0x8] sm:$0xff]
    %v257 = vld [vmem:[%s12 + $0x10] sm:$0xff]
    %v258 = vld [vmem:[%s12 + $0x18] sm:$0xff]
    %v260 = vsel %vm129, %v115, 0
    %262 = vmatpush.msra.mxu0 0.0
    %263 = vmatpush.msra.mxu0 0.0
    %264 = vmatpush.msra.mxu0 0.0
    %265 = vmatpush.msra.mxu0 0.0
    %266 = vmatpush.msra.mxu0 0.0
    %267 = vmatpush.msra.mxu0 0.0
    %268 = vmatpush.msra.mxu0 0.0
    %269 = vmatpush.msra.mxu0 0.0
    %270 = vmatpush.msra.mxu0 0.0
    %271 = vmatpush.msra.mxu0 0.0
    %272 = vmatpush.msra.mxu0 0.0
    %273 = vmatpush.msra.mxu0 0.0
    %274 = vmatpush.msra.mxu0 %v258
    %275 = vmatpush.msra.mxu0 %v257
    %276 = vmatpush.msra.mxu0 %v256
    %277 = vmatpush.msra.mxu0 %v255
    %278 = vmatmul.f32.gmra.mxu0 %v260
    %v279 = vpop.f32.mrf.mxu0
    %v280 = vadd.f32 0.0, %v279
    %281 = vdwg.mxu0
    %283 = vrot.lane.b32.xlu0 %v250, 32
    %v284 = vpop.permute.xlu0 %283
    %v285 = vsel %vm129, %v284, 0
    %287 = vmatpush.msra.mxu0 0.0
    %288 = vmatpush.msra.mxu0 0.0
    %289 = vmatpush.msra.mxu0 0.0
    %290 = vmatpush.msra.mxu0 0.0
    %291 = vmatpush.msra.mxu0 0.0
    %292 = vmatpush.msra.mxu0 0.0
    %293 = vmatpush.msra.mxu0 0.0
    %294 = vmatpush.msra.mxu0 0.0
    %295 = vmatpush.msra.mxu0 0.0
    %296 = vmatpush.msra.mxu0 0.0
    %297 = vmatpush.msra.mxu0 0.0
    %298 = vmatpush.msra.mxu0 0.0
    %299 = vmatpush.msra.mxu0 %v254
    %300 = vmatpush.msra.mxu0 %v253
    %301 = vmatpush.msra.mxu0 %v252
    %302 = vmatpush.msra.mxu0 %v251
    %303 = vmatmul.f32.gmra.mxu0 %v285
    %v304 = vpop.f32.mrf.mxu0
    %v305 = vadd.f32 %v280, %v304
    %306 = vdwg.mxu0
    %v307 = vld [vmem:[%s13] sm:$0x1]
    %v309 = vperm.slane %v307, 0
    %v311 = vadd.f32 %v305, %v309
    %v312 = vxor.u32 %v311, 2147483648
    %v313 = vmul.f32 %v312, 1.442695
    %v314 = vpow.pop %v313
    %v315 = vadd.f32 %v314, 1.0
    %v316 = vrcp.pop %v315
    %v317 = vmul.f32 %v315, %v316
    %v318 = vsub.f32 1.0, %v317
    %v319 = vmul.f32 %v316, %v318
    %v320 = vadd.f32 %v316, %v319
    %vm321 = vweird.f32 %v315
    %vm322 = vweird.f32 %v316
    %vm323 = vmor %vm321, %vm322
    %v324 = vsel %vm323, %v316, %v320
    %v325 = vand.u32 2147483647, %v315
    %vm326 = vcmp.eq.f32.partialorder %v325, 8.507059e+37
    %v327 = vand.u32 %v315, 2147483648
    %v328 = vor.u32 1.1754944e-38, %v327
    %v329 = vsel %vm326, %v328, %v324
    %v330 = vmul.f32 1.0, %v329
    %v331 = vmul.f32 %v330, 2.0
    %v332 = vsub.f32 %v331, 1.0
    %334 = vrot.lane.b32.xlu0 %v118, 32
    %v335 = vpop.permute.xlu0 %334
    %v337 = vmul.f32 %v330, %v335
    %339 = vrot.lane.b32.xlu0 %v332, 64
    %v340 = vpop.permute.xlu0 %339
    %v342 = vmul.f32 %v330, %v340
    %344 = vrot.lane.b32.xlu0 %v342, 32
    %v345 = vpop.permute.xlu0 %344
    %v347 = vadd.f32 %v337, %v345
    %v348 = vtanh.pop %v347
    %350 = vrot.lane.b32.xlu0 %v348, 64
    %v351 = vpop.permute.xlu0 %350
    %v353 = vmul.f32 %v330, %v351
    %v354 = vld [vmem:[%s14] sm:$0xff]
    %v355 = vld [vmem:[%s14 + $0x8] sm:$0xff]
    %v356 = vld [vmem:[%s14 + $0x10] sm:$0xff]
    %v357 = vld [vmem:[%s14 + $0x18] sm:$0xff]
    %359 = vrot.lane.b32.xlu0 %v353, 32
    %v360 = vpop.permute.xlu0 %359
    %v361 = vsel %vm129, %v360, 0
    %363 = vmatpush.msra.mxu0 0.0
    %364 = vmatpush.msra.mxu0 0.0
    %365 = vmatpush.msra.mxu0 0.0
    %366 = vmatpush.msra.mxu0 0.0
    %367 = vmatpush.msra.mxu0 0.0
    %368 = vmatpush.msra.mxu0 0.0
    %369 = vmatpush.msra.mxu0 0.0
    %370 = vmatpush.msra.mxu0 0.0
    %371 = vmatpush.msra.mxu0 0.0
    %372 = vmatpush.msra.mxu0 0.0
    %373 = vmatpush.msra.mxu0 0.0
    %374 = vmatpush.msra.mxu0 0.0
    %375 = vmatpush.msra.mxu0 %v357
    %376 = vmatpush.msra.mxu0 %v356
    %377 = vmatpush.msra.mxu0 %v355
    %378 = vmatpush.msra.mxu0 %v354
    %379 = vmatmul.f32.gmra.mxu0 %v361
    %v380 = vpop.f32.mrf.mxu0
    %v381 = vadd.f32 0.0, %v380
    %382 = vdwg.mxu0
    %v383 = vld [vmem:[%s4] sm:$0xff]
    %v384 = vld [vmem:[%s4 + $0x8] sm:$0xff]
    %v385 = vld [vmem:[%s4 + $0x10] sm:$0xff]
    %v386 = vld [vmem:[%s4 + $0x18] sm:$0xff]
    %388 = vset.pattern.permute.xlu0 32
    %389 = vperm.xlu0 %388, %v381
    %v390 = vpop.permute.xlu0 %389
    %v392 = vsel %vm129, %v381, 0
    %394 = vmatpush.msra.mxu0 0.0
    %395 = vmatpush.msra.mxu0 0.0
    %396 = vmatpush.msra.mxu0 0.0
    %397 = vmatpush.msra.mxu0 0.0
    %398 = vmatpush.msra.mxu0 0.0
    %399 = vmatpush.msra.mxu0 0.0
    %400 = vmatpush.msra.mxu0 0.0
    %401 = vmatpush.msra.mxu0 0.0
    %402 = vmatpush.msra.mxu0 0.0
    %403 = vmatpush.msra.mxu0 0.0
    %404 = vmatpush.msra.mxu0 0.0
    %405 = vmatpush.msra.mxu0 0.0
    %406 = vmatpush.msra.mxu0 %v386
    %407 = vmatpush.msra.mxu0 %v385
    %408 = vmatpush.msra.mxu0 %v384
    %409 = vmatpush.msra.mxu0 %v383
    %410 = vmatmul.f32.gmra.mxu0 %v392
    %v411 = vpop.f32.mrf.mxu0
    %v412 = vadd.f32 %v390, %v411
    %413 = vdwg.mxu0
    %v414 = vld [vmem:[%s6] sm:$0x3]
    %v415 = vadd.f32 %v412, %v414
    %vm416 = vcmask 123904
    %v417 = vsel %vm416, %v415, -inf
    %418 = vmax.xlane.f32.xlu0 %v417
    %v419 = vpop.xlane.xlu0 %418
    %v420 = vsub.f32 %v415, %v419
    %v421 = vmul.f32 %v420, 1.442695
    %v422 = vpow.pop %v421
    %v423 = vsel %vm416, %v422, 0.0
    %424 = vadd.xlane.f32.xlu0 %v423
    %v425 = vpop.xlane.xlu0 %424
    %v426 = vrcp.pop %v425
    %v427 = vmul.f32 %v425, %v426
    %v428 = vsub.f32 1.0, %v427
    %v429 = vmul.f32 %v426, %v428
    %v430 = vadd.f32 %v426, %v429
    %vm431 = vweird.f32 %v425
    %vm432 = vweird.f32 %v426
    %vm433 = vmor %vm431, %vm432
    %v434 = vsel %vm433, %v426, %v430
    %v435 = vand.u32 2147483647, %v425
    %vm436 = vcmp.eq.f32.partialorder %v435, 8.507059e+37
    %v437 = vand.u32 %v425, 2147483648
    %v438 = vor.u32 1.1754944e-38, %v437
    %v439 = vsel %vm436, %v438, %v434
    %v440 = vmul.f32 %v422, %v439
    %v441 = vld [vmem:[%s5] sm:$0xff]
    %v442 = vld [vmem:[%s5 + $0x8] sm:$0xff]
    %vm443 = vcmask 130048
    %v445 = vsel %vm443, %v440, 0
    %447 = vmatpush.msra.mxu0 0.0
    %448 = vmatpush.msra.mxu0 0.0
    %449 = vmatpush.msra.mxu0 0.0
    %450 = vmatpush.msra.mxu0 0.0
    %451 = vmatpush.msra.mxu0 0.0
    %452 = vmatpush.msra.mxu0 0.0
    %453 = vmatpush.msra.mxu0 0.0
    %454 = vmatpush.msra.mxu0 0.0
    %455 = vmatpush.msra.mxu0 0.0
    %456 = vmatpush.msra.mxu0 0.0
    %457 = vmatpush.msra.mxu0 0.0
    %458 = vmatpush.msra.mxu0 0.0
    %459 = vmatpush.msra.mxu0 0.0
    %460 = vmatpush.msra.mxu0 0.0
    %461 = vmatpush.msra.mxu0 %v442
    %462 = vmatpush.msra.mxu0 %v441
    %463 = vmatmul.f32.gmra.mxu0 %v445
    %v464 = vpop.f32.mrf.mxu0
    %v465 = vadd.f32 0.0, %v464
    %466 = vdwg.mxu0
    %467 = vrot.lane.b32.xlu0 %v440, 120
    %v468 = vpop.permute.xlu0 %467
    %v470 = vadd.f32 %v440, %v468
    %v471 = vld [vmem:[#allocation2] sm:$0xff]
    %v472 = vld [vmem:[#allocation2 + $0x8] sm:$0xff]
    %v473 = vld [vmem:[#allocation2 + $0x10] sm:$0xff]
    %v474 = vld [vmem:[#allocation2 + $0x18] sm:$0xff]
    %v475 = vld [vmem:[#allocation4] sm:$0xff]
    %v476 = vld [vmem:[#allocation4 + $0x8] sm:$0xff]
    %v477 = vld [vmem:[#allocation4 + $0x10] sm:$0xff]
    %v478 = vld [vmem:[#allocation4 + $0x18] sm:$0xff]
    %v480 = vsel %vm129, %v465, 0
    %482 = vmatpush.msra.mxu0 0.0
    %483 = vmatpush.msra.mxu0 0.0
    %484 = vmatpush.msra.mxu0 0.0
    %485 = vmatpush.msra.mxu0 0.0
    %486 = vmatpush.msra.mxu0 0.0
    %487 = vmatpush.msra.mxu0 0.0
    %488 = vmatpush.msra.mxu0 0.0
    %489 = vmatpush.msra.mxu0 0.0
    %490 = vmatpush.msra.mxu0 0.0
    %491 = vmatpush.msra.mxu0 0.0
    %492 = vmatpush.msra.mxu0 0.0
    %493 = vmatpush.msra.mxu0 0.0
    %494 = vmatpush.msra.mxu0 %v478
    %495 = vmatpush.msra.mxu0 %v477
    %496 = vmatpush.msra.mxu0 %v476
    %497 = vmatpush.msra.mxu0 %v475
    %498 = vmatmul.f32.gmra.mxu0 %v480
    %v499 = vpop.f32.mrf.mxu0
    %v500 = vadd.f32 0.0, %v499
    %501 = vdwg.mxu0
    %502 = vmatpush.msra.mxu0 0.0
    %503 = vmatpush.msra.mxu0 0.0
    %504 = vmatpush.msra.mxu0 0.0
    %505 = vmatpush.msra.mxu0 0.0
    %506 = vmatpush.msra.mxu0 0.0
    %507 = vmatpush.msra.mxu0 0.0
    %508 = vmatpush.msra.mxu0 0.0
    %509 = vmatpush.msra.mxu0 0.0
    %510 = vmatpush.msra.mxu0 0.0
    %511 = vmatpush.msra.mxu0 0.0
    %512 = vmatpush.msra.mxu0 0.0
    %513 = vmatpush.msra.mxu0 0.0
    %514 = vmatpush.msra.mxu0 %v474
    %515 = vmatpush.msra.mxu0 %v473
    %516 = vmatpush.msra.mxu0 %v472
    %517 = vmatpush.msra.mxu0 %v471
    %518 = vmatmul.f32.gmra.mxu0 %v361
    %v519 = vpop.f32.mrf.mxu0
    %v520 = vadd.f32 %v500, %v519
    %521 = vdwg.mxu0
    %v522 = vld [vmem:[%s17] sm:$0x1]
    %v524 = vperm.slane %v522, 0
    %v526 = vadd.f32 %v520, %v524
    %v527 = vtanh.pop %v526
    %v528 = vld [vmem:[#allocation6] sm:$0xff]
    %v529 = vld [vmem:[#allocation6 + $0x8] sm:$0xff]
    %v530 = vld [vmem:[#allocation6 + $0x10] sm:$0xff]
    %v531 = vld [vmem:[#allocation6 + $0x18] sm:$0xff]
    %v532 = vld [vmem:[%s19] sm:$0x1]
    %v534 = vperm.slane %v532, 0
    %v537 = vsel %vm129, %v527, 0
    %539 = vmatpush.msra.mxu0 0.0
    %540 = vmatpush.msra.mxu0 0.0
    %541 = vmatpush.msra.mxu0 0.0
    %542 = vmatpush.msra.mxu0 0.0
    %543 = vmatpush.msra.mxu0 0.0
    %544 = vmatpush.msra.mxu0 0.0
    %545 = vmatpush.msra.mxu0 0.0
    %546 = vmatpush.msra.mxu0 0.0
    %547 = vmatpush.msra.mxu0 0.0
    %548 = vmatpush.msra.mxu0 0.0
    %549 = vmatpush.msra.mxu0 0.0
    %550 = vmatpush.msra.mxu0 0.0
    %551 = vmatpush.msra.mxu0 %v531
    %552 = vmatpush.msra.mxu0 %v530
    %553 = vmatpush.msra.mxu0 %v529
    %554 = vmatpush.msra.mxu0 %v528
    %555 = vmatmul.f32.gmra.mxu0 %v537
    %v556 = vpop.f32.mrf.mxu0
    %v557 = vadd.f32 %v534, %v556
    %558 = vdwg.mxu0
    %vm559 = vcmask 517120
    %560 = vst.msk [vmem:[%s20] sm:$0x3] %vm559, %v557
    %561 = vrot.lane.b32.xlu0 %v250, 96
    %v562 = vpop.permute.xlu0 %561
    %vm564 = vcmask 779776
    %565 = vst.msk [vmem:[%s20] sm:$0x3] %vm564, %v562
    %vm566 = vcmask 1042176
    %567 = vst.msk [vmem:[%s20] sm:$0x3] %vm566, %v353
    %569 = vrot.lane.b32.xlu0 %v244, 96
    %v570 = vpop.permute.xlu0 %569
    %vm572 = vcmask 254976
    %573 = vst.msk [vmem:[%s20 + $0x2] sm:$0x3] %vm572, %v570
    %vm574 = vcmask 517376
    %575 = vst.msk [vmem:[%s20 + $0x2] sm:$0x3] %vm574, %v347
    %576 = vrot.lane.b32.xlu0 %v527, 64
    %v577 = vpop.permute.xlu0 %576
    %579 = vst.msk [vmem:[%s20 + $0x2] sm:$0x3] %vm564, %v577
    %581 = vrot.lane.b32.xlu0 %v470, 96
    %v582 = vpop.permute.xlu0 %581
    %vm584 = vcmask 845568
    %585 = vst.msk [vmem:[%s20 + $0x2] sm:$0x3] %vm584, %v582
    // Predicated region
    $region94: #{_decode_steps.1} parent=1 // pred_check
      _
    $region95: #{_decode_steps.1} parent=1 // pred_check_branch
      %587 = sbr.rel (0) target = $region97
    $region96: #{_decode_steps.1} parent=1 // pred_region
      _
    $region97: #{_decode_steps.1} parent=1 // pred_fallthru
      _
    // Predicated region
    $region98: #{_decode_steps.1} parent=1 // pred_check
      _
    $region99: #{_decode_steps.1} parent=1 // pred_check_branch
      %589 = sbr.rel (0) target = $region101
    $region100: #{_decode_steps.1} parent=1 // pred_region
      _
    $region101: #{_decode_steps.1} parent=1 // pred_fallthru
      _
    %590 = vsyncpa [#allocation3], 1
    %591 = vsyncpa [#allocation5], 1

</llo_original>
